<compile_context>
chip_gen: v6e
topology: v6e:2x2x1
jax: 0.10.0
libtpu: 0.0.40
codegen_flags: <defaults>
</compile_context>

<pallas_src>
import math

import jax
import jax.numpy as jnp
from jax.experimental import pallas as pl
from jax.experimental.pallas import tpu as pltpu

# ---- model config (small, consistent with the module) ----------------------
B = 2             # batch
T = 8             # sequence length
C = 32            # n_embd
N_HEAD = 4        # n_head
HD = C // N_HEAD  # head dim = 8
CP = 128          # lane-dense padded width for packed slabs / output


def causal_attn_kernel(x_ref, w_ref, b_ref, mask_ref, o_ref):
    """Single grid step handling the whole batch.

    x_ref:    (B*T, C)    flattened input tokens
    w_ref:    (C, 2*CP)   packed weights: [wq*s | wk | wv | 0 | wp | 0]
    b_ref:    (1, 2*CP)   packed biases:  [bq*s | bk | bv | 0 | bp | 0]
    mask_ref: (GT, GT)    additive bias: 0 where (same batch+head AND causal),
                          -1e30 elsewhere
    o_ref:    (B*T, CP)   lane-dense output slab (cols C: are zero)
    """
    BT = x_ref.shape[0]
    bt = BT // T              # batch elements in this step

    x2 = x_ref[...]                                               # (BT, C)

    # ONE fused projection matmul against the lane-dense first half of the
    # slab (q columns already carry the 1/sqrt(HD) scale); one fused bias add.
    qkv = jnp.dot(x2, w_ref[:, 0:CP],
                  preferred_element_type=jnp.float32) + b_ref[:, 0:CP]  # (BT, CP)

    # Stack every (batch, head) sub-problem along the sublane axis:
    # rows [(b*H + h)*T : (b*H + h + 1)*T] hold head h of batch b.
    # Static slices + concatenation only (8-lane granularity).
    def stack(off):           # (BT, CP) -> (GT, HD)
        return jnp.concatenate(
            [qkv[b * T:(b + 1) * T, off + h * HD: off + (h + 1) * HD]
             for b in range(bt) for h in range(N_HEAD)],
            axis=0)

    qs = stack(0)             # (GT, HD)  -- scaled q
    ks = stack(C)             # (GT, HD)
    vs = stack(2 * C)         # (GT, HD)

    # ONE MXU matmul computes every (batch, head) score block at once.
    # NOTE(review #9): contracting ((1,),(1,)) is the transposed-RHS ("NT")
    # matmul form; Mosaic feeds ks to the MXU without an explicit XLU vxpose.
    s = jax.lax.dot_general(qs, ks, (((1,), (1,)), ((), ())),
                            preferred_element_type=jnp.float32)   # (GT, GT)

    # Trace-time constant additive mask (block-diagonal + causal).
    s = s + mask_ref[...]

    # Single numerically-stable softmax for all rows (exact reciprocal: the
    # approx EUP path is borderline against the 1e-4 test tolerance).
    m = jnp.max(s, axis=-1, keepdims=True)
    p = jnp.exp(s - m)
    p = p * pl.reciprocal(jnp.sum(p, axis=-1, keepdims=True), approx=False)

    # ONE PV matmul for every (batch, head); masked-out columns contribute 0.
    y = jnp.dot(p, vs, preferred_element_type=jnp.float32)        # (GT, HD)

    # Merge heads back to (BT, C) (static slices + concat).
    y2 = jnp.concatenate(
        [jnp.concatenate([y[(b * N_HEAD + h) * T:(b * N_HEAD + h + 1) * T, :]
                          for h in range(N_HEAD)], axis=1)
         for b in range(bt)],
        axis=0)                                                    # (BT, C)

    # c_proj against the zero-padded second half of the slab: result is a
    # lane-dense (BT, 128) slab (cols C: exactly zero) -> unmasked full-lane
    # stores on writeback.
    out = jnp.dot(y2, w_ref[:, CP:2 * CP],
                  preferred_element_type=jnp.float32) + b_ref[:, CP:2 * CP]
    o_ref[...] = out.astype(o_ref.dtype)


def causal_self_attention(x, w_qkv, b_qkv, w_proj, b_proj):
    """x: (B, T, C) float32 -> (B, T, C) float32.

    Weights stored as (in_features, out_features): y = x @ W + b.
    """
    Bx, Tx, Cx = x.shape
    assert (Tx, Cx) == (T, C)
    GT = Bx * N_HEAD * T
    # Block-diagonal fusion cap; beyond this, flash-style tiling is required.
    assert GT <= 128, "GT > 128: switch to flash-style (Tq,Tk) tiling"

    scale = 1.0 / math.sqrt(HD)

    # ---- trace-time packing (all free XLA ops) ------------------------------
    # Packed weight slab (C, 2*CP): [wq*s | wk | wv | 0-pad | wp | 0-pad]
    w_slab = jnp.zeros((C, 2 * CP), jnp.float32)
    w_slab = w_slab.at[:, 0 * C:1 * C].set(w_qkv[:, 0 * C:1 * C] * scale)
    w_slab = w_slab.at[:, 1 * C:2 * C].set(w_qkv[:, 1 * C:2 * C])
    w_slab = w_slab.at[:, 2 * C:3 * C].set(w_qkv[:, 2 * C:3 * C])
    w_slab = w_slab.at[:, CP:CP + C].set(w_proj)

    # Packed bias slab (1, 2*CP), same layout.
    b_slab = jnp.zeros((1, 2 * CP), jnp.float32)
    b_slab = b_slab.at[0, 0 * C:1 * C].set(b_qkv[0 * C:1 * C] * scale)
    b_slab = b_slab.at[0, 1 * C:3 * C].set(b_qkv[1 * C:3 * C])
    b_slab = b_slab.at[0, CP:CP + C].set(b_proj)

    # Constant additive mask: 0 where same (batch,head) block AND causal,
    # -1e30 elsewhere (every row keeps a finite diagonal entry -> safe).
    r = jnp.arange(GT)[:, None]
    c = jnp.arange(GT)[None, :]
    valid = jnp.logical_and(r // T == c // T, c % T <= r % T)
    mask_bias = jnp.where(valid, 0.0, -1e30).astype(jnp.float32)

    x2 = x.reshape(Bx * T, C)   # free XLA reshape; kernel I/O stays 2-D

    out_padded = pl.pallas_call(
        causal_attn_kernel,
        out_shape=jax.ShapeDtypeStruct((Bx * T, CP), x.dtype),
        grid_spec=pltpu.PrefetchScalarGridSpec(
            num_scalar_prefetch=0,
            grid=(1,),                         # single step on all generations
            in_specs=[
                pl.BlockSpec((Bx * T, C), lambda i: (0, 0)),      # x (flat)
                pl.BlockSpec((C, 2 * CP), lambda i: (0, 0)),      # packed W
                pl.BlockSpec((1, 2 * CP), lambda i: (0, 0)),      # packed b
                pl.BlockSpec((GT, GT), lambda i: (0, 0)),         # mask bias
            ],
            out_specs=pl.BlockSpec((Bx * T, CP), lambda i: (0, 0)),
        ),
        compiler_params=pltpu.CompilerParams(
            dimension_semantics=("arbitrary",)),
    )(x2, w_slab, b_slab, mask_bias)

    return out_padded[:, :C].reshape(Bx, T, C)


def reference_attention(x, w_qkv, b_qkv, w_proj, b_proj):
    """Pure-JAX reference matching the PyTorch forward (eval mode)."""
    Bx, Tx, Cx = x.shape
    qkv = x @ w_qkv + b_qkv                       # (B, T, 3C)
    q, k, v = jnp.split(qkv, 3, axis=-1)

    def heads(t):  # (B, T, C) -> (B, H, T, HD)
        return t.reshape(Bx, Tx, N_HEAD, HD).transpose(0, 2, 1, 3)

    q, k, v = heads(q), heads(k), heads(v)
    s = jnp.einsum("bhtd,bhsd->bhts", q, k) / math.sqrt(HD)
    mask = jnp.tril(jnp.ones((Tx, Tx), dtype=bool))
    s = jnp.where(mask, s, -jnp.inf)
    p = jax.nn.softmax(s, axis=-1)
    y = jnp.einsum("bhts,bhsd->bhtd", p, v)
    y = y.transpose(0, 2, 1, 3).reshape(Bx, Tx, Cx)
    return y @ w_proj + b_proj


if __name__ == "__main__":
    key = jax.random.PRNGKey(0)
    kx, k1, k2, k3, k4 = jax.random.split(key, 5)

    x = jax.random.normal(kx, (B, T, C), dtype=jnp.float32)

    # deterministic parameter init (GPT-2-ish: normal(0, 0.02), small biases)
    w_qkv = 0.02 * jax.random.normal(k1, (C, 3 * C), dtype=jnp.float32)
    b_qkv = 0.01 * jax.random.normal(k2, (3 * C,), dtype=jnp.float32)
    w_proj = 0.02 * jax.random.normal(k3, (C, C), dtype=jnp.float32)
    b_proj = 0.01 * jax.random.normal(k4, (C,), dtype=jnp.float32)

    y_ref = reference_attention(x, w_qkv, b_qkv, w_proj, b_proj)

    y = causal_self_attention(x, w_qkv, b_qkv, w_proj, b_proj)
    y = jax.block_until_ready(y)
    assert jnp.allclose(y, y_ref, rtol=1e-4, atol=1e-4), "mismatch vs reference"

    print("KERNEL_OK")
</pallas_src>

<mosaic_0001>
module attributes {stable_mosaic.version = 11 : i64} {
  func.func @causal_attn_kernel(%arg0: i32, %arg1: memref<16x32xf32, #tpu.memory_space<vmem>>, %arg2: memref<32x256xf32, #tpu.memory_space<vmem>>, %arg3: memref<1x256xf32, #tpu.memory_space<vmem>>, %arg4: memref<64x64xf32, #tpu.memory_space<vmem>>, %arg5: memref<16x128xf32, #tpu.memory_space<vmem>>) attributes {dimension_semantics = [#tpu.dimension_semantics<arbitrary>], iteration_bounds = array<i64: 1>, scalar_prefetch = 0 : i64, scratch_operands = 0 : i64, tpu.core_type = #tpu.core_type<tc>, window_params = [{pipeline_mode = #tpu.pipeline_mode<synchronous>, transform_indices = @transform_0, window_bounds = array<i64: 16, 32>}, {pipeline_mode = #tpu.pipeline_mode<synchronous>, transform_indices = @transform_1, window_bounds = array<i64: 32, 256>}, {pipeline_mode = #tpu.pipeline_mode<synchronous>, transform_indices = @transform_2, window_bounds = array<i64: 1, 256>}, {pipeline_mode = #tpu.pipeline_mode<synchronous>, transform_indices = @transform_3, window_bounds = array<i64: 64, 64>}, {pipeline_mode = #tpu.pipeline_mode<synchronous>, transform_indices = @transform_4, window_bounds = array<i64: 16, 128>}]} {
    %c0 = arith.constant 0 : index
    %c0_0 = arith.constant 0 : index
    %0 = vector.load %arg1[%c0, %c0_0] : memref<16x32xf32, #tpu.memory_space<vmem>>, vector<16x32xf32>
    %c0_1 = arith.constant 0 : index
    %c0_2 = arith.constant 0 : index
    %1 = vector.load %arg2[%c0_1, %c0_2] : memref<32x256xf32, #tpu.memory_space<vmem>>, vector<32x128xf32>
    %cst = arith.constant dense<0.000000e+00> : vector<16x128xf32>
    %2 = tpu.matmul %0, %1, %cst {dimension_numbers = #tpu.dot_dimension_numbers<[1], [0], [0], [1], [0, 0, 1, 1], [], []>} : vector<16x32xf32>, vector<32x128xf32>, vector<16x128xf32> -> vector<16x128xf32>
    %c0_3 = arith.constant 0 : index
    %c0_4 = arith.constant 0 : index
    %3 = vector.load %arg3[%c0_3, %c0_4] : memref<1x256xf32, #tpu.memory_space<vmem>>, vector<1x128xf32>
    %4 = vector.broadcast %3 : vector<1x128xf32> to vector<16x128xf32>
    %5 = arith.addf %2, %4 : vector<16x128xf32>
    %6 = vector.extract_strided_slice %5 {offsets = [0, 0], sizes = [8, 8], strides = [1, 1]} : vector<16x128xf32> to vector<8x8xf32>
    %7 = vector.extract_strided_slice %5 {offsets = [0, 8], sizes = [8, 8], strides = [1, 1]} : vector<16x128xf32> to vector<8x8xf32>
    %8 = vector.extract_strided_slice %5 {offsets = [0, 16], sizes = [8, 8], strides = [1, 1]} : vector<16x128xf32> to vector<8x8xf32>
    %9 = vector.extract_strided_slice %5 {offsets = [0, 24], sizes = [8, 8], strides = [1, 1]} : vector<16x128xf32> to vector<8x8xf32>
    %10 = vector.extract_strided_slice %5 {offsets = [8, 0], sizes = [8, 8], strides = [1, 1]} : vector<16x128xf32> to vector<8x8xf32>
    %11 = vector.extract_strided_slice %5 {offsets = [8, 8], sizes = [8, 8], strides = [1, 1]} : vector<16x128xf32> to vector<8x8xf32>
    %12 = vector.extract_strided_slice %5 {offsets = [8, 16], sizes = [8, 8], strides = [1, 1]} : vector<16x128xf32> to vector<8x8xf32>
    %13 = vector.extract_strided_slice %5 {offsets = [8, 24], sizes = [8, 8], strides = [1, 1]} : vector<16x128xf32> to vector<8x8xf32>
    %14 = tpu.concatenate %6, %7, %8, %9, %10, %11, %12, %13 in 0 : vector<8x8xf32>, vector<8x8xf32>, vector<8x8xf32>, vector<8x8xf32>, vector<8x8xf32>, vector<8x8xf32>, vector<8x8xf32>, vector<8x8xf32> -> vector<64x8xf32>
    %15 = vector.extract_strided_slice %5 {offsets = [0, 32], sizes = [8, 8], strides = [1, 1]} : vector<16x128xf32> to vector<8x8xf32>
    %16 = vector.extract_strided_slice %5 {offsets = [0, 40], sizes = [8, 8], strides = [1, 1]} : vector<16x128xf32> to vector<8x8xf32>
    %17 = vector.extract_strided_slice %5 {offsets = [0, 48], sizes = [8, 8], strides = [1, 1]} : vector<16x128xf32> to vector<8x8xf32>
    %18 = vector.extract_strided_slice %5 {offsets = [0, 56], sizes = [8, 8], strides = [1, 1]} : vector<16x128xf32> to vector<8x8xf32>
    %19 = vector.extract_strided_slice %5 {offsets = [8, 32], sizes = [8, 8], strides = [1, 1]} : vector<16x128xf32> to vector<8x8xf32>
    %20 = vector.extract_strided_slice %5 {offsets = [8, 40], sizes = [8, 8], strides = [1, 1]} : vector<16x128xf32> to vector<8x8xf32>
    %21 = vector.extract_strided_slice %5 {offsets = [8, 48], sizes = [8, 8], strides = [1, 1]} : vector<16x128xf32> to vector<8x8xf32>
    %22 = vector.extract_strided_slice %5 {offsets = [8, 56], sizes = [8, 8], strides = [1, 1]} : vector<16x128xf32> to vector<8x8xf32>
    %23 = tpu.concatenate %15, %16, %17, %18, %19, %20, %21, %22 in 0 : vector<8x8xf32>, vector<8x8xf32>, vector<8x8xf32>, vector<8x8xf32>, vector<8x8xf32>, vector<8x8xf32>, vector<8x8xf32>, vector<8x8xf32> -> vector<64x8xf32>
    %24 = vector.extract_strided_slice %5 {offsets = [0, 64], sizes = [8, 8], strides = [1, 1]} : vector<16x128xf32> to vector<8x8xf32>
    %25 = vector.extract_strided_slice %5 {offsets = [0, 72], sizes = [8, 8], strides = [1, 1]} : vector<16x128xf32> to vector<8x8xf32>
    %26 = vector.extract_strided_slice %5 {offsets = [0, 80], sizes = [8, 8], strides = [1, 1]} : vector<16x128xf32> to vector<8x8xf32>
    %27 = vector.extract_strided_slice %5 {offsets = [0, 88], sizes = [8, 8], strides = [1, 1]} : vector<16x128xf32> to vector<8x8xf32>
    %28 = vector.extract_strided_slice %5 {offsets = [8, 64], sizes = [8, 8], strides = [1, 1]} : vector<16x128xf32> to vector<8x8xf32>
    %29 = vector.extract_strided_slice %5 {offsets = [8, 72], sizes = [8, 8], strides = [1, 1]} : vector<16x128xf32> to vector<8x8xf32>
    %30 = vector.extract_strided_slice %5 {offsets = [8, 80], sizes = [8, 8], strides = [1, 1]} : vector<16x128xf32> to vector<8x8xf32>
    %31 = vector.extract_strided_slice %5 {offsets = [8, 88], sizes = [8, 8], strides = [1, 1]} : vector<16x128xf32> to vector<8x8xf32>
    %32 = tpu.concatenate %24, %25, %26, %27, %28, %29, %30, %31 in 0 : vector<8x8xf32>, vector<8x8xf32>, vector<8x8xf32>, vector<8x8xf32>, vector<8x8xf32>, vector<8x8xf32>, vector<8x8xf32>, vector<8x8xf32> -> vector<64x8xf32>
    %cst_5 = arith.constant dense<0.000000e+00> : vector<64x64xf32>
    %33 = tpu.matmul %14, %23, %cst_5 {dimension_numbers = #tpu.dot_dimension_numbers<[1], [1], [0], [0], [0, 0, 1, 0], [], []>} : vector<64x8xf32>, vector<64x8xf32>, vector<64x64xf32> -> vector<64x64xf32>
    %c0_6 = arith.constant 0 : index
    %c0_7 = arith.constant 0 : index
    %34 = vector.load %arg4[%c0_6, %c0_7] : memref<64x64xf32, #tpu.memory_space<vmem>>, vector<64x64xf32>
    %35 = arith.addf %33, %34 : vector<64x64xf32>
    %cst_8 = arith.constant dense<0xFF800000> : vector<64xf32>
    %36 = vector.multi_reduction <maximumf>, %35, %cst_8 [1] : vector<64x64xf32> to vector<64xf32>
    %37 = vector.shape_cast %36 : vector<64xf32> to vector<64x1xf32>
    %38 = vector.broadcast %37 : vector<64x1xf32> to vector<64x64xf32>
    %39 = arith.subf %35, %38 : vector<64x64xf32>
    %40 = math.exp %39 : vector<64x64xf32>
    %cst_9 = arith.constant dense<0.000000e+00> : vector<64xf32>
    %41 = vector.multi_reduction <add>, %40, %cst_9 [1] : vector<64x64xf32> to vector<64xf32>
    %42 = vector.shape_cast %41 : vector<64xf32> to vector<64x1xf32>
    %43 = tpu.reciprocal %42 : vector<64x1xf32> -> vector<64x1xf32>
    %44 = vector.broadcast %43 : vector<64x1xf32> to vector<64x64xf32>
    %45 = arith.mulf %40, %44 : vector<64x64xf32>
    %cst_10 = arith.constant dense<0.000000e+00> : vector<64x8xf32>
    %46 = tpu.matmul %45, %32, %cst_10 {dimension_numbers = #tpu.dot_dimension_numbers<[1], [0], [0], [1], [0, 0, 1, 1], [], []>} : vector<64x64xf32>, vector<64x8xf32>, vector<64x8xf32> -> vector<64x8xf32>
    %47 = vector.extract_strided_slice %46 {offsets = [0, 0], sizes = [8, 8], strides = [1, 1]} : vector<64x8xf32> to vector<8x8xf32>
    %48 = vector.extract_strided_slice %46 {offsets = [8, 0], sizes = [8, 8], strides = [1, 1]} : vector<64x8xf32> to vector<8x8xf32>
    %49 = vector.extract_strided_slice %46 {offsets = [16, 0], sizes = [8, 8], strides = [1, 1]} : vector<64x8xf32> to vector<8x8xf32>
    %50 = vector.extract_strided_slice %46 {offsets = [24, 0], sizes = [8, 8], strides = [1, 1]} : vector<64x8xf32> to vector<8x8xf32>
    %51 = tpu.concatenate %47, %48, %49, %50 in 1 : vector<8x8xf32>, vector<8x8xf32>, vector<8x8xf32>, vector<8x8xf32> -> vector<8x32xf32>
    %52 = vector.extract_strided_slice %46 {offsets = [32, 0], sizes = [8, 8], strides = [1, 1]} : vector<64x8xf32> to vector<8x8xf32>
    %53 = vector.extract_strided_slice %46 {offsets = [40, 0], sizes = [8, 8], strides = [1, 1]} : vector<64x8xf32> to vector<8x8xf32>
    %54 = vector.extract_strided_slice %46 {offsets = [48, 0], sizes = [8, 8], strides = [1, 1]} : vector<64x8xf32> to vector<8x8xf32>
    %55 = vector.extract_strided_slice %46 {offsets = [56, 0], sizes = [8, 8], strides = [1, 1]} : vector<64x8xf32> to vector<8x8xf32>
    %56 = tpu.concatenate %52, %53, %54, %55 in 1 : vector<8x8xf32>, vector<8x8xf32>, vector<8x8xf32>, vector<8x8xf32> -> vector<8x32xf32>
    %57 = tpu.concatenate %51, %56 in 0 : vector<8x32xf32>, vector<8x32xf32> -> vector<16x32xf32>
    %c0_11 = arith.constant 0 : index
    %c128 = arith.constant 128 : index
    %58 = vector.load %arg2[%c0_11, %c128] : memref<32x256xf32, #tpu.memory_space<vmem>>, vector<32x128xf32>
    %cst_12 = arith.constant dense<0.000000e+00> : vector<16x128xf32>
    %59 = tpu.matmul %57, %58, %cst_12 {dimension_numbers = #tpu.dot_dimension_numbers<[1], [0], [0], [1], [0, 0, 1, 1], [], []>} : vector<16x32xf32>, vector<32x128xf32>, vector<16x128xf32> -> vector<16x128xf32>
    %c0_13 = arith.constant 0 : index
    %c128_14 = arith.constant 128 : index
    %60 = vector.load %arg3[%c0_13, %c128_14] : memref<1x256xf32, #tpu.memory_space<vmem>>, vector<1x128xf32>
    %61 = vector.broadcast %60 : vector<1x128xf32> to vector<16x128xf32>
    %62 = arith.addf %59, %61 : vector<16x128xf32>
    %c0_15 = arith.constant 0 : index
    %c0_16 = arith.constant 0 : index
    %63 = vector.load %arg5[%c0_15, %c0_16] : memref<16x128xf32, #tpu.memory_space<vmem>>, vector<16x128xf32>
    tpu.vector_store %arg5[%c0_15, %c0_16], %62 {strides = array<i32>} : memref<16x128xf32, #tpu.memory_space<vmem>>, vector<16x128xf32>,
    return
  }
  func.func @transform_0(%arg0: i32) -> (i32, i32) {
    %c0_i32 = arith.constant 0 : i32
    %c0_i32_0 = arith.constant 0 : i32
    %c0_i32_1 = arith.constant 0 : i32
    return %c0_i32, %c0_i32_0 : i32, i32
  }
  func.func @transform_1(%arg0: i32) -> (i32, i32) {
    %c0_i32 = arith.constant 0 : i32
    %c0_i32_0 = arith.constant 0 : i32
    %c0_i32_1 = arith.constant 0 : i32
    return %c0_i32, %c0_i32_0 : i32, i32
  }
  func.func @transform_2(%arg0: i32) -> (i32, i32) {
    %c0_i32 = arith.constant 0 : i32
    %c0_i32_0 = arith.constant 0 : i32
    %c0_i32_1 = arith.constant 0 : i32
    return %c0_i32, %c0_i32_0 : i32, i32
  }
  func.func @transform_3(%arg0: i32) -> (i32, i32) {
    %c0_i32 = arith.constant 0 : i32
    %c0_i32_0 = arith.constant 0 : i32
    %c0_i32_1 = arith.constant 0 : i32
    return %c0_i32, %c0_i32_0 : i32, i32
  }
  func.func @transform_4(%arg0: i32) -> (i32, i32) {
    %c0_i32 = arith.constant 0 : i32
    %c0_i32_0 = arith.constant 0 : i32
    %c0_i32_1 = arith.constant 0 : i32
    return %c0_i32, %c0_i32_0 : i32, i32
  }
}

</mosaic_0001>

<llo_original>
// kernel: tpu_custom_call.1
$region0: #{tpu_custom_call.1}
  #allocation0 [shape = 'u32[]', space=smem, size = 0x4, offset = 0x4, fixed_abs, tag = 'smem constant byte address 0x4 - core index']
  #allocation1 [shape = 'u32[144,128]{1,0:T(1,128)}', space=vmem, size = 0x12000, scoped, tag = 'internal scratch']
  %s0 = inlined_call_operand.hbm [shape: f32[16,32], index: 0, kind: input, shape index: {}]
  %s1 = inlined_call_operand.hbm [shape: f32[32,256], index: 1, kind: input, shape index: {}]
  %s2 = inlined_call_operand.vmem [shape: f32[1,256], index: 2, kind: input, shape index: {}]
  %s3 = inlined_call_operand.hbm [shape: f32[64,64], index: 3, kind: input, shape index: {}]
  %s4 = inlined_call_operand.hbm [shape: f32[16,128], index: 4, kind: output, shape index: {}]
  %s5 = sld [smem:[#allocation0]]
  $region38: #{tpu_custom_call.1} parent=0
    _
  %s7 = ssub.s32 1, %s5
  %s8 = scalar_select 0, %s7, %s5
  $region1: #{tpu_custom_call.1} parent=0
    #allocation2 [shape = 'u8[8192]{0}', space=vmem, size = 0x2000, scoped, tag = 'input window, operand 0, single buffered']
    #allocation3 [shape = 's32[1]{0}', space=sflag, size = 0x4, scoped, tag = 'scoped memory for tpu_custom_call.1']
    #allocation4 [shape = 's32[1]{0}', space=sflag, size = 0x4, scoped, tag = 'scoped memory for tpu_custom_call.1']
    #allocation5 [shape = 'u8[32768]{0}', space=vmem, size = 0x8000, scoped, tag = 'input window, operand 1, single buffered']
    #allocation6 [shape = 's32[1]{0}', space=sflag, size = 0x4, scoped, tag = 'scoped memory for tpu_custom_call.1']
    #allocation7 [shape = 'u8[32768]{0}', space=vmem, size = 0x8000, scoped, tag = 'input window, operand 3, single buffered']
    #allocation8 [shape = 'u8[8192]{0}', space=vmem, size = 0x2000, scoped, tag = 'output window, operand 0, single buffered']
    %9 = vsyncpa [#allocation3], 0
    %10 = vsyncpa [#allocation6], 0
    %11 = vsyncpa [#allocation4], 0
    // Predicated region
    $region2: #{tpu_custom_call.1} parent=1 // pred_check
      _
    $region3: #{tpu_custom_call.1} parent=1 // pred_check_branch
      %13 = sbr.rel (0) target = $region5
    $region4: #{tpu_custom_call.1} parent=1 // pred_region
      %s15 = ssub.s32 256, 256
      %16 = vsyncadd [#allocation3], %s15
      %s17 = sshll.u32 [#allocation2], 4
      %s18 = int_to_ptr.vmem [resolvable:$true] %s17
      %23 = dma.hbm_to_vmem [thread:$0]  %s0, 256, %s18, [#allocation3], 128, 128, 8
    $region5: #{tpu_custom_call.1} parent=1 // pred_fallthru
      _
    // Predicated region
    $region6: #{tpu_custom_call.1} parent=1 // pred_check
      _
    $region7: #{tpu_custom_call.1} parent=1 // pred_check_branch
      %25 = sbr.rel (0) target = $region9
    $region8: #{tpu_custom_call.1} parent=1 // pred_region
      %s27 = ssub.s32 1024, 1024
      %28 = vsyncadd [#allocation6], %s27
      %s29 = sshll.u32 [#allocation5], 4
      %s30 = int_to_ptr.vmem [resolvable:$true] %s29
      %35 = dma.hbm_to_vmem [thread:$0]  %s1, 1024, %s30, [#allocation6], 256, 256, 16
    $region9: #{tpu_custom_call.1} parent=1 // pred_fallthru
      _
    // Predicated region
    $region10: #{tpu_custom_call.1} parent=1 // pred_check
      _
    $region11: #{tpu_custom_call.1} parent=1 // pred_check_branch
      %37 = sbr.rel (0) target = $region13
    $region12: #{tpu_custom_call.1} parent=1 // pred_region
      _
    $region13: #{tpu_custom_call.1} parent=1 // pred_fallthru
      _
    // Predicated region
    $region14: #{tpu_custom_call.1} parent=1 // pred_check
      _
    $region15: #{tpu_custom_call.1} parent=1 // pred_check_branch
      %39 = sbr.rel (0) target = $region17
    $region16: #{tpu_custom_call.1} parent=1 // pred_region
      %s41 = ssub.s32 1024, 1024
      %42 = vsyncadd [#allocation6], %s41
      %s43 = sshll.u32 [#allocation7], 4
      %s44 = int_to_ptr.vmem [resolvable:$true] %s43
      %49 = dma.hbm_to_vmem [thread:$0]  %s3, 1024, %s44, [#allocation6], 128, 128, 8
    $region17: #{tpu_custom_call.1} parent=1 // pred_fallthru
      _
    // Predicated region
    $region18: #{tpu_custom_call.1} parent=1 // pred_check
      _
    $region19: #{tpu_custom_call.1} parent=1 // pred_check_branch
      %51 = sbr.rel (0) target = $region21
    $region20: #{tpu_custom_call.1} parent=1 // pred_region
      %52 = dma.done [#allocation3], 256
    $region21: #{tpu_custom_call.1} parent=1 // pred_fallthru
      _
    // Predicated region
    $region22: #{tpu_custom_call.1} parent=1 // pred_check
      _
    $region23: #{tpu_custom_call.1} parent=1 // pred_check_branch
      %54 = sbr.rel (0) target = $region25
    $region24: #{tpu_custom_call.1} parent=1 // pred_region
      %55 = dma.done [#allocation6], 1024
    $region25: #{tpu_custom_call.1} parent=1 // pred_fallthru
      _
    // Predicated region
    $region26: #{tpu_custom_call.1} parent=1 // pred_check
      _
    $region27: #{tpu_custom_call.1} parent=1 // pred_check_branch
      %57 = sbr.rel (0) target = $region29
    $region28: #{tpu_custom_call.1} parent=1 // pred_region
      %58 = dma.done [#allocation6], 1024
    $region29: #{tpu_custom_call.1} parent=1 // pred_fallthru
      _
    %v59 = vld [vmem:[#allocation2] sm:$0xff]
    %v60 = vld [vmem:[#allocation2 + $0x8] sm:$0xff]
    %v61 = vld [vmem:[#allocation5] sm:$0xff]
    %v62 = vld [vmem:[#allocation5 + $0x10] sm:$0xff]
    %v63 = vld [vmem:[#allocation5 + $0x20] sm:$0xff]
    %v64 = vld [vmem:[#allocation5 + $0x30] sm:$0xff]
    %v65 = vld [vmem:[%s2] sm:$0x1]
    %v67 = vlaneseq
    %v68 = vshrl.u32 %v67, 7
    %v69 = vsub.s32 0, %v68
    %v70 = vrot.slane %v65, %v69
    %vm72 = vcmask 261120
    %v74 = vsel %vm72, %v59, 0
    %v77 = vsel %vm72, %v60, 0
    %79 = vmatprep.subr.mxu0 0.0
    %80 = vmatpush1.msra.mxu0 0.0
    %81 = vmatprep.subr.mxu0 0.0
    %82 = vmatpush1.msra.mxu0 0.0
    %83 = vmatprep.subr.mxu0 0.0
    %84 = vmatpush1.msra.mxu0 0.0
    %85 = vmatprep.subr.mxu0 0.0
    %86 = vmatpush1.msra.mxu0 0.0
    %87 = vmatprep.subr.mxu0 0.0
    %88 = vmatpush1.msra.mxu0 0.0
    %89 = vmatprep.subr.mxu0 0.0
    %90 = vmatpush1.msra.mxu0 0.0
    %91 = vmatprep.subr.mxu0 0.0
    %92 = vmatpush1.msra.mxu0 0.0
    %93 = vmatprep.subr.mxu0 0.0
    %94 = vmatpush1.msra.mxu0 0.0
    %95 = vmatprep.subr.mxu0 0.0
    %96 = vmatpush1.msra.mxu0 0.0
    %97 = vmatprep.subr.mxu0 0.0
    %98 = vmatpush1.msra.mxu0 0.0
    %99 = vmatprep.subr.mxu0 0.0
    %100 = vmatpush1.msra.mxu0 0.0
    %101 = vmatprep.subr.mxu0 0.0
    %102 = vmatpush1.msra.mxu0 0.0
    %103 = vmatprep.subr.mxu0 0.0
    %104 = vmatpush1.msra.mxu0 %v64
    %105 = vmatprep.subr.mxu0 0.0
    %106 = vmatpush1.msra.mxu0 %v63
    %107 = vmatprep.subr.mxu0 0.0
    %108 = vmatpush1.msra.mxu0 %v62
    %109 = vmatprep.subr.mxu0 0.0
    %110 = vmatpush1.msra.mxu0 %v61
    %111 = vmatprep.subr.mxu0 0.0
    %112 = vmatpush2.msra.mxu0 0.0
    %113 = vmatprep.subr.mxu0 0.0
    %114 = vmatpush2.msra.mxu0 0.0
    %115 = vmatprep.subr.mxu0 0.0
    %116 = vmatpush2.msra.mxu0 0.0
    %117 = vmatprep.subr.mxu0 0.0
    %118 = vmatpush2.msra.mxu0 0.0
    %119 = vmatprep.subr.mxu0 0.0
    %120 = vmatpush2.msra.mxu0 0.0
    %121 = vmatprep.subr.mxu0 0.0
    %122 = vmatpush2.msra.mxu0 0.0
    %123 = vmatprep.subr.mxu0 0.0
    %124 = vmatpush2.msra.mxu0 0.0
    %125 = vmatprep.subr.mxu0 0.0
    %126 = vmatpush2.msra.mxu0 0.0
    %127 = vmatprep.subr.mxu0 0.0
    %128 = vmatpush2.msra.mxu0 0.0
    %129 = vmatprep.subr.mxu0 0.0
    %130 = vmatpush2.msra.mxu0 0.0
    %131 = vmatprep.subr.mxu0 0.0
    %132 = vmatpush2.msra.mxu0 0.0
    %133 = vmatprep.subr.mxu0 0.0
    %134 = vmatpush2.msra.mxu0 0.0
    %135 = vmatprep.subr.mxu0 0.0
    %136 = vmatpush2.msra.mxu0 0.0
    %137 = vmatprep.subr.mxu0 0.0
    %138 = vmatpush2.msra.mxu0 0.0
    %139 = vmatprep.subr.mxu0 0.0
    %140 = vmatpush2.msra.mxu0 0.0
    %141 = vmatprep.subr.mxu0 0.0
    %142 = vmatpush2.msra.mxu0 0.0
    %143 = vmatprep.mubr.f32.mxu0 0.0
    %144 = vmatmul.mubr.f32.gmra.mxu0 %v74
    %v145 = vpop.f32.mrf.mxu0
    %v146 = vadd.f32 %v70, %v145
    %v147 = vpop.f32.mrf.mxu0
    %148 = vmatprep.mubr.f32.mxu0 0.0
    %149 = vmatmul.mubr.f32.gmra.mxu0 %v77
    %v150 = vpop.f32.mrf.mxu0
    %v151 = vadd.f32 %v70, %v150
    %v152 = vpop.f32.mrf.mxu0
    %153 = vdwg.mxu0
    %155 = vrot.lane.b32.xlu0 %v146, 120
    %v156 = vpop.permute.xlu0 %155
    %157 = vrot.lane.b32.xlu0 %v146, 112
    %v158 = vpop.permute.xlu0 %157
    %159 = vrot.lane.b32.xlu0 %v146, 104
    %v160 = vpop.permute.xlu0 %159
    %162 = vrot.lane.b32.xlu0 %v151, 120
    %v163 = vpop.permute.xlu0 %162
    %164 = vrot.lane.b32.xlu0 %v151, 112
    %v165 = vpop.permute.xlu0 %164
    %166 = vrot.lane.b32.xlu0 %v151, 104
    %v167 = vpop.permute.xlu0 %166
    %v168 = vld [vmem:[#allocation7] sm:$0xff]
    %v169 = vld [vmem:[#allocation7 + $0x8] sm:$0xff]
    %v170 = vld [vmem:[#allocation7 + $0x10] sm:$0xff]
    %v171 = vld [vmem:[#allocation7 + $0x18] sm:$0xff]
    %v172 = vld [vmem:[#allocation7 + $0x20] sm:$0xff]
    %v173 = vld [vmem:[#allocation7 + $0x28] sm:$0xff]
    %v174 = vld [vmem:[#allocation7 + $0x30] sm:$0xff]
    %v175 = vld [vmem:[#allocation7 + $0x38] sm:$0xff]
    %176 = vrot.lane.b32.xlu0 %v146, 96
    %v177 = vpop.permute.xlu0 %176
    %178 = vrot.lane.b32.xlu0 %v156, 96
    %v179 = vpop.permute.xlu0 %178
    %180 = vrot.lane.b32.xlu0 %v158, 96
    %v181 = vpop.permute.xlu0 %180
    %182 = vrot.lane.b32.xlu0 %v160, 96
    %v183 = vpop.permute.xlu0 %182
    %184 = vrot.lane.b32.xlu0 %v151, 96
    %v185 = vpop.permute.xlu0 %184
    %186 = vrot.lane.b32.xlu0 %v163, 96
    %v187 = vpop.permute.xlu0 %186
    %188 = vrot.lane.b32.xlu0 %v165, 96
    %v189 = vpop.permute.xlu0 %188
    %190 = vrot.lane.b32.xlu0 %v167, 96
    %v191 = vpop.permute.xlu0 %190
    %vm192 = vcmask 64512
    %v193 = vsel %vm192, %v146, 0
    %v195 = vsel %vm192, %v156, 0
    %v197 = vsel %vm192, %v158, 0
    %v199 = vsel %vm192, %v160, 0
    %v201 = vsel %vm192, %v151, 0
    %v203 = vsel %vm192, %v163, 0
    %v205 = vsel %vm192, %v165, 0
    %v207 = vsel %vm192, %v167, 0
    %v209 = vsel %vm192, %v177, 0
    %v211 = vsel %vm192, %v179, 0
    %v213 = vsel %vm192, %v181, 0
    %v215 = vsel %vm192, %v183, 0
    %v217 = vsel %vm192, %v185, 0
    %v219 = vsel %vm192, %v187, 0
    %v221 = vsel %vm192, %v189, 0
    %v223 = vsel %vm192, %v191, 0
    %225 = vmatprep.subr.mxu0 0.0
    %226 = vmatpush1.xpose.msra.mxu0 0.0
    %227 = vmatprep.subr.mxu0 0.0
    %228 = vmatpush1.xpose.msra.mxu0 0.0
    %229 = vmatprep.subr.mxu0 0.0
    %230 = vmatpush1.xpose.msra.mxu0 0.0
    %231 = vmatprep.subr.mxu0 0.0
    %232 = vmatpush1.xpose.msra.mxu0 0.0
    %233 = vmatprep.subr.mxu0 0.0
    %234 = vmatpush1.xpose.msra.mxu0 0.0
    %235 = vmatprep.subr.mxu0 0.0
    %236 = vmatpush1.xpose.msra.mxu0 0.0
    %237 = vmatprep.subr.mxu0 0.0
    %238 = vmatpush1.xpose.msra.mxu0 0.0
    %239 = vmatprep.subr.mxu0 0.0
    %240 = vmatpush1.xpose.msra.mxu0 0.0
    %241 = vmatprep.subr.mxu0 0.0
    %242 = vmatpush1.xpose.msra.mxu0 %v223
    %243 = vmatprep.subr.mxu0 0.0
    %244 = vmatpush1.xpose.msra.mxu0 %v221
    %245 = vmatprep.subr.mxu0 0.0
    %246 = vmatpush1.xpose.msra.mxu0 %v219
    %247 = vmatprep.subr.mxu0 0.0
    %248 = vmatpush1.xpose.msra.mxu0 %v217
    %249 = vmatprep.subr.mxu0 0.0
    %250 = vmatpush1.xpose.msra.mxu0 %v215
    %251 = vmatprep.subr.mxu0 0.0
    %252 = vmatpush1.xpose.msra.mxu0 %v213
    %253 = vmatprep.subr.mxu0 0.0
    %254 = vmatpush1.xpose.msra.mxu0 %v211
    %255 = vmatprep.subr.mxu0 0.0
    %256 = vmatpush1.xpose.msra.mxu0 %v209
    %257 = vmatprep.subr.mxu0 0.0
    %258 = vmatpush2.xpose.msra.mxu0 0.0
    %259 = vmatprep.subr.mxu0 0.0
    %260 = vmatpush2.xpose.msra.mxu0 0.0
    %261 = vmatprep.subr.mxu0 0.0
    %262 = vmatpush2.xpose.msra.mxu0 0.0
    %263 = vmatprep.subr.mxu0 0.0
    %264 = vmatpush2.xpose.msra.mxu0 0.0
    %265 = vmatprep.subr.mxu0 0.0
    %266 = vmatpush2.xpose.msra.mxu0 0.0
    %267 = vmatprep.subr.mxu0 0.0
    %268 = vmatpush2.xpose.msra.mxu0 0.0
    %269 = vmatprep.subr.mxu0 0.0
    %270 = vmatpush2.xpose.msra.mxu0 0.0
    %271 = vmatprep.subr.mxu0 0.0
    %272 = vmatpush2.xpose.msra.mxu0 0.0
    %273 = vmatprep.subr.mxu0 0.0
    %274 = vmatpush2.xpose.msra.mxu0 0.0
    %275 = vmatprep.subr.mxu0 0.0
    %276 = vmatpush2.xpose.msra.mxu0 0.0
    %277 = vmatprep.subr.mxu0 0.0
    %278 = vmatpush2.xpose.msra.mxu0 0.0
    %279 = vmatprep.subr.mxu0 0.0
    %280 = vmatpush2.xpose.msra.mxu0 0.0
    %281 = vmatprep.subr.mxu0 0.0
    %282 = vmatpush2.xpose.msra.mxu0 0.0
    %283 = vmatprep.subr.mxu0 0.0
    %284 = vmatpush2.xpose.msra.mxu0 0.0
    %285 = vmatprep.subr.mxu0 0.0
    %286 = vmatpush2.xpose.msra.mxu0 0.0
    %287 = vmatprep.subr.mxu0 0.0
    %288 = vmatpush2.xpose.msra.mxu0 0.0
    %289 = vmatprep.mubr.f32.mxu0 0.0
    %290 = vmatmul.mubr.f32.gmra.mxu0 %v193
    %v291 = vpop.f32.mrf.mxu0
    %v292 = vadd.f32 %v168, %v291
    %v293 = vpop.f32.mrf.mxu0
    %294 = vmatprep.mubr.f32.mxu0 0.0
    %295 = vmatmul.mubr.f32.gmra.mxu0 %v195
    %v296 = vpop.f32.mrf.mxu0
    %v297 = vadd.f32 %v169, %v296
    %v298 = vpop.f32.mrf.mxu0
    %299 = vmatprep.mubr.f32.mxu0 0.0
    %300 = vmatmul.mubr.f32.gmra.mxu0 %v197
    %v301 = vpop.f32.mrf.mxu0
    %v302 = vadd.f32 %v170, %v301
    %v303 = vpop.f32.mrf.mxu0
    %304 = vmatprep.mubr.f32.mxu0 0.0
    %305 = vmatmul.mubr.f32.gmra.mxu0 %v199
    %v306 = vpop.f32.mrf.mxu0
    %v307 = vadd.f32 %v171, %v306
    %v308 = vpop.f32.mrf.mxu0
    %309 = vmatprep.mubr.f32.mxu0 0.0
    %310 = vmatmul.mubr.f32.gmra.mxu0 %v201
    %v311 = vpop.f32.mrf.mxu0
    %v312 = vadd.f32 %v172, %v311
    %v313 = vpop.f32.mrf.mxu0
    %314 = vmatprep.mubr.f32.mxu0 0.0
    %315 = vmatmul.mubr.f32.gmra.mxu0 %v203
    %v316 = vpop.f32.mrf.mxu0
    %v317 = vadd.f32 %v173, %v316
    %v318 = vpop.f32.mrf.mxu0
    %319 = vmatprep.mubr.f32.mxu0 0.0
    %320 = vmatmul.mubr.f32.gmra.mxu0 %v205
    %v321 = vpop.f32.mrf.mxu0
    %v322 = vadd.f32 %v174, %v321
    %v323 = vpop.f32.mrf.mxu0
    %324 = vmatprep.mubr.f32.mxu0 0.0
    %325 = vmatmul.mubr.f32.gmra.mxu0 %v207
    %v326 = vpop.f32.mrf.mxu0
    %v327 = vadd.f32 %v175, %v326
    %v328 = vpop.f32.mrf.mxu0
    %329 = vdwg.mxu0
    %vm330 = vcmask 523264
    %v331 = vsel %vm330, %v292, -inf
    %332 = vmax.xlane.f32.xlu0 %v331
    %v333 = vpop.xlane.xlu0 %332
    %v334 = vsel %vm330, %v297, -inf
    %335 = vmax.xlane.f32.xlu0 %v334
    %v336 = vpop.xlane.xlu0 %335
    %v337 = vsel %vm330, %v302, -inf
    %338 = vmax.xlane.f32.xlu0 %v337
    %v339 = vpop.xlane.xlu0 %338
    %v340 = vsel %vm330, %v307, -inf
    %341 = vmax.xlane.f32.xlu0 %v340
    %v342 = vpop.xlane.xlu0 %341
    %v343 = vsel %vm330, %v312, -inf
    %344 = vmax.xlane.f32.xlu0 %v343
    %v345 = vpop.xlane.xlu0 %344
    %v346 = vsel %vm330, %v317, -inf
    %347 = vmax.xlane.f32.xlu0 %v346
    %v348 = vpop.xlane.xlu0 %347
    %v349 = vsel %vm330, %v322, -inf
    %350 = vmax.xlane.f32.xlu0 %v349
    %v351 = vpop.xlane.xlu0 %350
    %v352 = vsel %vm330, %v327, -inf
    %353 = vmax.xlane.f32.xlu0 %v352
    %v354 = vpop.xlane.xlu0 %353
    %v355 = vsub.f32 %v292, %v333
    %v356 = vsub.f32 %v297, %v336
    %v357 = vsub.f32 %v302, %v339
    %v358 = vsub.f32 %v307, %v342
    %v359 = vsub.f32 %v312, %v345
    %v360 = vsub.f32 %v317, %v348
    %v361 = vsub.f32 %v322, %v351
    %v362 = vsub.f32 %v327, %v354
    %v363 = vmul.f32 %v355, 1.442695
    %v364 = vpow.pop %v363
    %v365 = vmul.f32 %v356, 1.442695
    %v366 = vpow.pop %v365
    %v367 = vmul.f32 %v357, 1.442695
    %v368 = vpow.pop %v367
    %v369 = vmul.f32 %v358, 1.442695
    %v370 = vpow.pop %v369
    %v371 = vmul.f32 %v359, 1.442695
    %v372 = vpow.pop %v371
    %v373 = vmul.f32 %v360, 1.442695
    %v374 = vpow.pop %v373
    %v375 = vmul.f32 %v361, 1.442695
    %v376 = vpow.pop %v375
    %v377 = vmul.f32 %v362, 1.442695
    %v378 = vpow.pop %v377
    %v379 = vsel %vm330, %v364, 0.0
    %380 = vadd.xlane.f32.xlu0 %v379
    %v381 = vpop.xlane.xlu0 %380
    %v382 = vsel %vm330, %v366, 0.0
    %383 = vadd.xlane.f32.xlu0 %v382
    %v384 = vpop.xlane.xlu0 %383
    %v385 = vsel %vm330, %v368, 0.0
    %386 = vadd.xlane.f32.xlu0 %v385
    %v387 = vpop.xlane.xlu0 %386
    %v388 = vsel %vm330, %v370, 0.0
    %389 = vadd.xlane.f32.xlu0 %v388
    %v390 = vpop.xlane.xlu0 %389
    %v391 = vsel %vm330, %v372, 0.0
    %392 = vadd.xlane.f32.xlu0 %v391
    %v393 = vpop.xlane.xlu0 %392
    %v394 = vsel %vm330, %v374, 0.0
    %395 = vadd.xlane.f32.xlu0 %v394
    %v396 = vpop.xlane.xlu0 %395
    %v397 = vsel %vm330, %v376, 0.0
    %398 = vadd.xlane.f32.xlu0 %v397
    %v399 = vpop.xlane.xlu0 %398
    %v400 = vsel %vm330, %v378, 0.0
    %401 = vadd.xlane.f32.xlu0 %v400
    %v402 = vpop.xlane.xlu0 %401
    %v403 = vrcp.pop %v381
    %v404 = vrcp.pop %v384
    %v405 = vrcp.pop %v387
    %v406 = vrcp.pop %v390
    %v407 = vrcp.pop %v393
    %v408 = vrcp.pop %v396
    %v409 = vrcp.pop %v399
    %v410 = vrcp.pop %v402
    %v411 = vmul.f32 %v364, %v403
    %v412 = vmul.f32 %v366, %v404
    %v413 = vmul.f32 %v368, %v405
    %v414 = vmul.f32 %v370, %v406
    %v415 = vmul.f32 %v372, %v407
    %v416 = vmul.f32 %v374, %v408
    %v417 = vmul.f32 %v376, %v409
    %v418 = vmul.f32 %v378, %v410
    %419 = vrot.lane.b32.xlu0 %v146, 64
    %v420 = vpop.permute.xlu0 %419
    %421 = vrot.lane.b32.xlu0 %v156, 64
    %v422 = vpop.permute.xlu0 %421
    %423 = vrot.lane.b32.xlu0 %v158, 64
    %v424 = vpop.permute.xlu0 %423
    %425 = vrot.lane.b32.xlu0 %v160, 64
    %v426 = vpop.permute.xlu0 %425
    %427 = vrot.lane.b32.xlu0 %v151, 64
    %v428 = vpop.permute.xlu0 %427
    %429 = vrot.lane.b32.xlu0 %v163, 64
    %v430 = vpop.permute.xlu0 %429
    %431 = vrot.lane.b32.xlu0 %v165, 64
    %v432 = vpop.permute.xlu0 %431
    %433 = vrot.lane.b32.xlu0 %v167, 64
    %v434 = vpop.permute.xlu0 %433
    %v444 = vsel %vm330, %v411, 0
    %v447 = vsel %vm330, %v412, 0
    %v450 = vsel %vm330, %v413, 0
    %v453 = vsel %vm330, %v414, 0
    %v456 = vsel %vm330, %v415, 0
    %v459 = vsel %vm330, %v416, 0
    %v462 = vsel %vm330, %v417, 0
    %v465 = vsel %vm330, %v418, 0
    %467 = vmatprep.subr.mxu0 0.0
    %468 = vmatpush1.msra.mxu0 0.0
    %469 = vmatprep.subr.mxu0 0.0
    %470 = vmatpush1.msra.mxu0 0.0
    %471 = vmatprep.subr.mxu0 0.0
    %472 = vmatpush1.msra.mxu0 0.0
    %473 = vmatprep.subr.mxu0 0.0
    %474 = vmatpush1.msra.mxu0 0.0
    %475 = vmatprep.subr.mxu0 0.0
    %476 = vmatpush1.msra.mxu0 0.0
    %477 = vmatprep.subr.mxu0 0.0
    %478 = vmatpush1.msra.mxu0 0.0
    %479 = vmatprep.subr.mxu0 0.0
    %480 = vmatpush1.msra.mxu0 0.0
    %481 = vmatprep.subr.mxu0 0.0
    %482 = vmatpush1.msra.mxu0 0.0
    %483 = vmatprep.subr.mxu0 0.0
    %484 = vmatpush1.msra.mxu0 %v434
    %485 = vmatprep.subr.mxu0 0.0
    %486 = vmatpush1.msra.mxu0 %v432
    %487 = vmatprep.subr.mxu0 0.0
    %488 = vmatpush1.msra.mxu0 %v430
    %489 = vmatprep.subr.mxu0 0.0
    %490 = vmatpush1.msra.mxu0 %v428
    %491 = vmatprep.subr.mxu0 0.0
    %492 = vmatpush1.msra.mxu0 %v426
    %493 = vmatprep.subr.mxu0 0.0
    %494 = vmatpush1.msra.mxu0 %v424
    %495 = vmatprep.subr.mxu0 0.0
    %496 = vmatpush1.msra.mxu0 %v422
    %497 = vmatprep.subr.mxu0 0.0
    %498 = vmatpush1.msra.mxu0 %v420
    %499 = vmatprep.subr.mxu0 0.0
    %500 = vmatpush2.msra.mxu0 0.0
    %501 = vmatprep.subr.mxu0 0.0
    %502 = vmatpush2.msra.mxu0 0.0
    %503 = vmatprep.subr.mxu0 0.0
    %504 = vmatpush2.msra.mxu0 0.0
    %505 = vmatprep.subr.mxu0 0.0
    %506 = vmatpush2.msra.mxu0 0.0
    %507 = vmatprep.subr.mxu0 0.0
    %508 = vmatpush2.msra.mxu0 0.0
    %509 = vmatprep.subr.mxu0 0.0
    %510 = vmatpush2.msra.mxu0 0.0
    %511 = vmatprep.subr.mxu0 0.0
    %512 = vmatpush2.msra.mxu0 0.0
    %513 = vmatprep.subr.mxu0 0.0
    %514 = vmatpush2.msra.mxu0 0.0
    %515 = vmatprep.subr.mxu0 0.0
    %516 = vmatpush2.msra.mxu0 0.0
    %517 = vmatprep.subr.mxu0 0.0
    %518 = vmatpush2.msra.mxu0 0.0
    %519 = vmatprep.subr.mxu0 0.0
    %520 = vmatpush2.msra.mxu0 0.0
    %521 = vmatprep.subr.mxu0 0.0
    %522 = vmatpush2.msra.mxu0 0.0
    %523 = vmatprep.subr.mxu0 0.0
    %524 = vmatpush2.msra.mxu0 0.0
    %525 = vmatprep.subr.mxu0 0.0
    %526 = vmatpush2.msra.mxu0 0.0
    %527 = vmatprep.subr.mxu0 0.0
    %528 = vmatpush2.msra.mxu0 0.0
    %529 = vmatprep.subr.mxu0 0.0
    %530 = vmatpush2.msra.mxu0 0.0
    %531 = vmatprep.mubr.f32.mxu0 0.0
    %532 = vmatmul.mubr.f32.gmra.mxu0 %v444
    %v533 = vpop.f32.mrf.mxu0
    %v534 = vadd.f32 0.0, %v533
    %v535 = vpop.f32.mrf.mxu0
    %536 = vmatprep.mubr.f32.mxu0 0.0
    %537 = vmatmul.mubr.f32.gmra.mxu0 %v447
    %v538 = vpop.f32.mrf.mxu0
    %v539 = vadd.f32 0.0, %v538
    %v540 = vpop.f32.mrf.mxu0
    %541 = vmatprep.mubr.f32.mxu0 0.0
    %542 = vmatmul.mubr.f32.gmra.mxu0 %v450
    %v543 = vpop.f32.mrf.mxu0
    %v544 = vadd.f32 0.0, %v543
    %v545 = vpop.f32.mrf.mxu0
    %546 = vmatprep.mubr.f32.mxu0 0.0
    %547 = vmatmul.mubr.f32.gmra.mxu0 %v453
    %v548 = vpop.f32.mrf.mxu0
    %v549 = vadd.f32 0.0, %v548
    %v550 = vpop.f32.mrf.mxu0
    %551 = vmatprep.mubr.f32.mxu0 0.0
    %552 = vmatmul.mubr.f32.gmra.mxu0 %v456
    %v553 = vpop.f32.mrf.mxu0
    %v554 = vadd.f32 0.0, %v553
    %v555 = vpop.f32.mrf.mxu0
    %556 = vmatprep.mubr.f32.mxu0 0.0
    %557 = vmatmul.mubr.f32.gmra.mxu0 %v459
    %v558 = vpop.f32.mrf.mxu0
    %v559 = vadd.f32 0.0, %v558
    %v560 = vpop.f32.mrf.mxu0
    %561 = vmatprep.mubr.f32.mxu0 0.0
    %562 = vmatmul.mubr.f32.gmra.mxu0 %v462
    %v563 = vpop.f32.mrf.mxu0
    %v564 = vadd.f32 0.0, %v563
    %v565 = vpop.f32.mrf.mxu0
    %566 = vmatprep.mubr.f32.mxu0 0.0
    %567 = vmatmul.mubr.f32.gmra.mxu0 %v465
    %v568 = vpop.f32.mrf.mxu0
    %v569 = vadd.f32 0.0, %v568
    %v570 = vpop.f32.mrf.mxu0
    %571 = vdwg.mxu0
    %573 = vrot.lane.b32.xlu0 %v539, 8
    %v574 = vpop.permute.xlu0 %573
    %577 = vrot.lane.b32.xlu0 %v544, 16
    %v578 = vpop.permute.xlu0 %577
    %581 = vrot.lane.b32.xlu0 %v549, 24
    %v582 = vpop.permute.xlu0 %581
    %v584 = vsel %vm192, %v534, %v574
    %vm585 = vcmask 130048
    %v586 = vsel %vm585, %v584, %v578
    %vm587 = vcmask 195584
    %v588 = vsel %vm587, %v586, %v582
    %590 = vrot.lane.b32.xlu0 %v559, 8
    %v591 = vpop.permute.xlu0 %590
    %594 = vrot.lane.b32.xlu0 %v564, 16
    %v595 = vpop.permute.xlu0 %594
    %598 = vrot.lane.b32.xlu0 %v569, 24
    %v599 = vpop.permute.xlu0 %598
    %v601 = vsel %vm192, %v554, %v591
    %v602 = vsel %vm585, %v601, %v595
    %v603 = vsel %vm587, %v602, %v599
    %v604 = vld [vmem:[#allocation5 + $0x8] sm:$0xff]
    %v605 = vld [vmem:[#allocation5 + $0x18] sm:$0xff]
    %v606 = vld [vmem:[#allocation5 + $0x28] sm:$0xff]
    %v607 = vld [vmem:[#allocation5 + $0x38] sm:$0xff]
    %v608 = vld [vmem:[%s2 + $0x1] sm:$0x1]
    %v610 = vlaneseq
    %v611 = vshrl.u32 %v610, 7
    %v612 = vsub.s32 0, %v611
    %v613 = vrot.slane %v608, %v612
    %v616 = vsel %vm72, %v588, 0
    %v619 = vsel %vm72, %v603, 0
    %621 = vmatprep.subr.mxu0 0.0
    %622 = vmatpush1.msra.mxu0 0.0
    %623 = vmatprep.subr.mxu0 0.0
    %624 = vmatpush1.msra.mxu0 0.0
    %625 = vmatprep.subr.mxu0 0.0
    %626 = vmatpush1.msra.mxu0 0.0
    %627 = vmatprep.subr.mxu0 0.0
    %628 = vmatpush1.msra.mxu0 0.0
    %629 = vmatprep.subr.mxu0 0.0
    %630 = vmatpush1.msra.mxu0 0.0
    %631 = vmatprep.subr.mxu0 0.0
    %632 = vmatpush1.msra.mxu0 0.0
    %633 = vmatprep.subr.mxu0 0.0
    %634 = vmatpush1.msra.mxu0 0.0
    %635 = vmatprep.subr.mxu0 0.0
    %636 = vmatpush1.msra.mxu0 0.0
    %637 = vmatprep.subr.mxu0 0.0
    %638 = vmatpush1.msra.mxu0 0.0
    %639 = vmatprep.subr.mxu0 0.0
    %640 = vmatpush1.msra.mxu0 0.0
    %641 = vmatprep.subr.mxu0 0.0
    %642 = vmatpush1.msra.mxu0 0.0
    %643 = vmatprep.subr.mxu0 0.0
    %644 = vmatpush1.msra.mxu0 0.0
    %645 = vmatprep.subr.mxu0 0.0
    %646 = vmatpush1.msra.mxu0 %v607
    %647 = vmatprep.subr.mxu0 0.0
    %648 = vmatpush1.msra.mxu0 %v606
    %649 = vmatprep.subr.mxu0 0.0
    %650 = vmatpush1.msra.mxu0 %v605
    %651 = vmatprep.subr.mxu0 0.0
    %652 = vmatpush1.msra.mxu0 %v604
    %653 = vmatprep.subr.mxu0 0.0
    %654 = vmatpush2.msra.mxu0 0.0
    %655 = vmatprep.subr.mxu0 0.0
    %656 = vmatpush2.msra.mxu0 0.0
    %657 = vmatprep.subr.mxu0 0.0
    %658 = vmatpush2.msra.mxu0 0.0
    %659 = vmatprep.subr.mxu0 0.0
    %660 = vmatpush2.msra.mxu0 0.0
    %661 = vmatprep.subr.mxu0 0.0
    %662 = vmatpush2.msra.mxu0 0.0
    %663 = vmatprep.subr.mxu0 0.0
    %664 = vmatpush2.msra.mxu0 0.0
    %665 = vmatprep.subr.mxu0 0.0
    %666 = vmatpush2.msra.mxu0 0.0
    %667 = vmatprep.subr.mxu0 0.0
    %668 = vmatpush2.msra.mxu0 0.0
    %669 = vmatprep.subr.mxu0 0.0
    %670 = vmatpush2.msra.mxu0 0.0
    %671 = vmatprep.subr.mxu0 0.0
    %672 = vmatpush2.msra.mxu0 0.0
    %673 = vmatprep.subr.mxu0 0.0
    %674 = vmatpush2.msra.mxu0 0.0
    %675 = vmatprep.subr.mxu0 0.0
    %676 = vmatpush2.msra.mxu0 0.0
    %677 = vmatprep.subr.mxu0 0.0
    %678 = vmatpush2.msra.mxu0 0.0
    %679 = vmatprep.subr.mxu0 0.0
    %680 = vmatpush2.msra.mxu0 0.0
    %681 = vmatprep.subr.mxu0 0.0
    %682 = vmatpush2.msra.mxu0 0.0
    %683 = vmatprep.subr.mxu0 0.0
    %684 = vmatpush2.msra.mxu0 0.0
    %685 = vmatprep.mubr.f32.mxu0 0.0
    %686 = vmatmul.mubr.f32.gmra.mxu0 %v616
    %v687 = vpop.f32.mrf.mxu0
    %v688 = vadd.f32 %v613, %v687
    %v689 = vpop.f32.mrf.mxu0
    %690 = vmatprep.mubr.f32.mxu0 0.0
    %691 = vmatmul.mubr.f32.gmra.mxu0 %v619
    %v692 = vpop.f32.mrf.mxu0
    %v693 = vadd.f32 %v613, %v692
    %v694 = vpop.f32.mrf.mxu0
    %695 = vdwg.mxu0
    %696 = vst [vmem:[#allocation8] sm:$0xff] %v688
    %697 = vst [vmem:[#allocation8 + $0x8] sm:$0xff] %v693
    // Predicated region
    $region30: #{tpu_custom_call.1} parent=1 // pred_check
      _
    $region31: #{tpu_custom_call.1} parent=1 // pred_check_branch
      %699 = sbr.rel (0) target = $region33
    $region32: #{tpu_custom_call.1} parent=1 // pred_region
      %s701 = ssub.s32 256, 256
      %702 = vsyncadd [#allocation4], %s701
      %s703 = sshll.u32 [#allocation8], 4
      %s704 = int_to_ptr.vmem [resolvable:$true] %s703
      %709 = dma.vmem_to_hbm [thread:$0]  %s704, 256, %s4, [#allocation4], 128, 128, 8
    $region33: #{tpu_custom_call.1} parent=1 // pred_fallthru
      _
    // Predicated region
    $region34: #{tpu_custom_call.1} parent=1 // pred_check
      _
    $region35: #{tpu_custom_call.1} parent=1 // pred_check_branch
      %711 = sbr.rel (0) target = $region37
    $region36: #{tpu_custom_call.1} parent=1 // pred_region
      %712 = dma.done [#allocation4], 256
    $region37: #{tpu_custom_call.1} parent=1 // pred_fallthru
      _
    %713 = vsyncpa [#allocation3], 1
    %714 = vsyncpa [#allocation6], 1
    %715 = vsyncpa [#allocation4], 1

</llo_original>
